<compile_context>
chip_gen: v6e
topology: v6e:2x2x1
jax: 0.10.0
libtpu: 0.0.40
codegen_flags: <defaults>
</compile_context>

<pallas_src>
import functools
import math

import jax
import jax.numpy as jnp
from jax.experimental import pallas as pl
from jax.experimental.pallas import tpu as pltpu

_LANE = 128
_SUBLANE = 8


def _round_up(v, m):
    return ((v + m - 1) // m) * m


def _gate_kernel(x_ref, wcat_ref, bcat_ref, w2_ref, b2_ref,
                 preds_ref, unc_ref, *, kp):
    # relu + global average pool. The 1/HW scale is folded into wcat in the
    # wrapper, so a plain sum over the lane (HW) axis is exact.
    x = jnp.maximum(x_ref[...], 0.0)                         # (TN, C, HW)
    pooled = jnp.sum(x, axis=-1)                             # (TN, C)

    # Fused first-layer heads: [classifier | estimator-layer-1] in one MXU pass.
    z = jnp.dot(pooled, wcat_ref[...],
                preferred_element_type=jnp.float32) + bcat_ref[...]
    preds_ref[...] = z[:, :kp].astype(preds_ref.dtype)       # lane-aligned slice

    # Uncertainty estimator: ReLU -> Linear -> Sigmoid (padded lanes stay 0).
    h = jnp.maximum(z[:, kp:], 0.0)                          # (TN, HP)
    u = jnp.dot(h, w2_ref[...],
                preferred_element_type=jnp.float32) + b2_ref[...]
    unc_ref[...] = jax.nn.sigmoid(u).astype(unc_ref.dtype)


def learned_uncertainty_gate(x_nchw, params):
    """x_nchw: (N, C, H, W) float32. params: dict of weights (see init_params)."""
    n, c, h, w = x_nchw.shape
    hw = h * w

    wc, bc = params["wc"], params["bc"]              # (C, K), (1, K)
    w1, b1 = params["w1"], params["b1"]              # (C, C//2), (1, C//2)
    w2, b2 = params["w2"], params["b2"]              # (C//2, 1), (1, 1)
    k = wc.shape[1]
    hid = w1.shape[1]

    # Lane-dense padded head widths; padded columns/rows are zero so results in
    # the real lanes are unchanged (outputs sliced back below).
    kp = _round_up(k, _LANE)
    hp = _round_up(hid, _LANE)
    up = _LANE

    # Fold the 1/HW pooling scale into the first-layer weights (trace-time) and
    # fuse the two first-layer heads into a single (C, KP+HP) slab.
    inv_hw = 1.0 / float(hw)
    wcat = jnp.concatenate(
        [jnp.pad(wc * inv_hw, ((0, 0), (0, kp - k))),
         jnp.pad(w1 * inv_hw, ((0, 0), (0, hp - hid)))], axis=1)   # (C, KP+HP)
    bcat = jnp.concatenate(
        [jnp.pad(bc, ((0, 0), (0, kp - k))),
         jnp.pad(b1, ((0, 0), (0, hp - hid)))], axis=1)            # (1, KP+HP)
    w2_p = jnp.pad(w2, ((0, hp - hid), (0, up - 1)))               # (HP, UP)
    b2_p = jnp.pad(b2, ((0, 0), (0, up - 1)))                      # (1, UP)

    # (N, C, H, W) -> (N, C, HW): a FREE reshape (no HBM transpose copy).
    x = x_nchw.reshape(n, c, hw)

    # Per-generation VMEM sizing: ~75% of physical VMEM, minus headroom.
    try:
        vmem_cap = int(getattr(pltpu.get_tpu_info(), "vmem_capacity_bytes",
                               64 * 1024 * 1024))
    except Exception:
        vmem_cap = 64 * 1024 * 1024
    vmem_limit = (vmem_cap * 3) // 4
    budget = vmem_limit - (2 << 20)

    # VMEM footprints with tiling padding (sublane->8, lane->128); biases (1,X)
    # occupy (8,X). Weight slabs counted double-buffered (conservative: their
    # index_maps are constant, so Mosaic may single-buffer them anyway).
    c_sl = _round_up(c, _SUBLANE)
    hw_ln = _round_up(hw, _LANE)
    hp_sl = _round_up(hp, _SUBLANE)
    weight_bytes = 2 * 4 * (c_sl * (kp + hp) + _SUBLANE * (kp + hp)
                            + hp_sl * up + _SUBLANE * up)
    # Per-sample cost: double-buffered x block + double-buffered output blocks.
    per_sample = 2 * 4 * (c_sl * hw_ln + kp + up)
    slack = 2 * 4 * _SUBLANE * (kp + up)     # sublane round-up of output blocks
    avail = max(budget - weight_bytes - slack, per_sample)
    tn_budget = max(1, avail // per_sample)

    # Batch tile: fit the budget, keep >= ~4 grid steps for large batches so
    # DMA/compute overlap and both v7x TensorCores get work; sublane-align tn
    # unless the whole batch fits in one block.
    tn = int(min(tn_budget, n))
    if n >= 4 * _SUBLANE:
        tn = min(tn, pl.cdiv(n, 4))
    if tn < n:
        tn = max(_SUBLANE, (tn // _SUBLANE) * _SUBLANE)
    grid_n = pl.cdiv(n, tn)
    n_out = grid_n * tn          # only the (tiny) outputs carry row padding
    # TODO(synk): if a single sample's (C, HW) slab is too large even for tn=8,
    # add an inner HW grid axis with a VMEM pooling accumulator.

    flops = (2 * n * c * hw                 # relu + pool
             + 2 * n * c * (kp + hp)        # fused first-layer matmul
             + 2 * n * hp * up)             # estimator second layer
    bytes_accessed = (n * c * hw * 4
                      + (c * (kp + hp) + (kp + hp) + hp * up + up) * 4
                      + n_out * (kp + up) * 4)
    cost = pl.CostEstimate(flops=flops, transcendentals=n,
                           bytes_accessed=bytes_accessed)

    grid_spec = pltpu.PrefetchScalarGridSpec(
        num_scalar_prefetch=0,
        grid=(grid_n,),
        in_specs=[
            pl.BlockSpec((tn, c, hw), lambda i: (i, 0, 0)),     # streamed x tiles
            pl.BlockSpec((c, kp + hp), lambda i: (0, 0)),       # resident weights
            pl.BlockSpec((1, kp + hp), lambda i: (0, 0)),
            pl.BlockSpec((hp, up), lambda i: (0, 0)),
            pl.BlockSpec((1, up), lambda i: (0, 0)),
        ],
        out_specs=(
            pl.BlockSpec((tn, kp), lambda i: (i, 0)),
            pl.BlockSpec((tn, up), lambda i: (i, 0)),
        ),
    )

    preds_p, unc_p = pl.pallas_call(
        functools.partial(_gate_kernel, kp=kp),
        out_shape=(
            jax.ShapeDtypeStruct((n_out, kp), jnp.float32),
            jax.ShapeDtypeStruct((n_out, up), jnp.float32),
        ),
        grid_spec=grid_spec,
        compiler_params=pltpu.CompilerParams(
            dimension_semantics=("parallel",),   # v7x: shard batch over 2 TCs
            vmem_limit_bytes=int(vmem_limit),
        ),
        cost_estimate=cost,
    )(x, wcat, bcat, w2_p, b2_p)

    return preds_p[:n, :k], unc_p[:n, :1]


def init_params(key, num_features, num_classes):
    """Deterministic synthetic init: xavier-uniform weights (matching the
    module's initialize_weights), PyTorch-Linear-style uniform biases."""
    def xavier(key, fan_in, fan_out):
        a = math.sqrt(6.0 / (fan_in + fan_out))
        # stored as (in, out) so the kernel can do x @ W
        return jax.random.uniform(key, (fan_in, fan_out), jnp.float32, -a, a)

    def bias(key, fan_in, fan_out):
        bnd = 1.0 / math.sqrt(fan_in)
        return jax.random.uniform(key, (1, fan_out), jnp.float32, -bnd, bnd)

    hidden = num_features // 2
    ks = jax.random.split(key, 6)
    return {
        "wc": xavier(ks[0], num_features, num_classes),
        "bc": bias(ks[1], num_features, num_classes),
        "w1": xavier(ks[2], num_features, hidden),
        "b1": bias(ks[3], num_features, hidden),
        "w2": xavier(ks[4], hidden, 1),
        "b2": bias(ks[5], hidden, 1),
    }


if __name__ == "__main__":
    key = jax.random.PRNGKey(0)
    k_x, k_p = jax.random.split(key)

    N, C, H, W = 2, 32, 16, 16          # num_features = C = 32
    NUM_CLASSES = 8

    x = jax.random.normal(k_x, (N, C, H, W), jnp.float32)
    params = init_params(k_p, C, NUM_CLASSES)

    preds, unc = learned_uncertainty_gate(x, params)
    jax.block_until_ready((preds, unc))

    # reference check in plain JAX
    pooled = jnp.mean(jnp.maximum(x, 0.0), axis=(2, 3))
    preds_ref = pooled @ params["wc"] + params["bc"]
    h_ref = jnp.maximum(pooled @ params["w1"] + params["b1"], 0.0)
    unc_ref = jax.nn.sigmoid(h_ref @ params["w2"] + params["b2"])
    assert preds.shape == (N, NUM_CLASSES) and unc.shape == (N, 1)
    assert jnp.allclose(preds, preds_ref, atol=1e-5), "predictions mismatch"
    assert jnp.allclose(unc, unc_ref, atol=1e-5), "uncertainty mismatch"

    print("KERNEL_OK")
</pallas_src>

<mosaic_0001>
module attributes {stable_mosaic.version = 11 : i64} {
  func.func @_gate_kernel(%arg0: i32, %arg1: memref<2x32x256xf32, #tpu.memory_space<vmem>>, %arg2: memref<32x256xf32, #tpu.memory_space<vmem>>, %arg3: memref<1x256xf32, #tpu.memory_space<vmem>>, %arg4: memref<128x128xf32, #tpu.memory_space<vmem>>, %arg5: memref<1x128xf32, #tpu.memory_space<vmem>>, %arg6: memref<2x128xf32, #tpu.memory_space<vmem>>, %arg7: memref<2x128xf32, #tpu.memory_space<vmem>>) attributes {dimension_semantics = [#tpu.dimension_semantics<parallel>], iteration_bounds = array<i64: 1>, scalar_prefetch = 0 : i64, scratch_operands = 0 : i64, tpu.core_type = #tpu.core_type<tc>, window_params = [{transform_indices = @transform_0, window_bounds = array<i64: 2, 32, 256>}, {pipeline_mode = #tpu.pipeline_mode<synchronous>, transform_indices = @transform_1, window_bounds = array<i64: 32, 256>}, {pipeline_mode = #tpu.pipeline_mode<synchronous>, transform_indices = @transform_2, window_bounds = array<i64: 1, 256>}, {pipeline_mode = #tpu.pipeline_mode<synchronous>, transform_indices = @transform_3, window_bounds = array<i64: 128, 128>}, {pipeline_mode = #tpu.pipeline_mode<synchronous>, transform_indices = @transform_4, window_bounds = array<i64: 1, 128>}, {transform_indices = @transform_5, window_bounds = array<i64: 2, 128>}, {transform_indices = @transform_6, window_bounds = array<i64: 2, 128>}]} {
    %c0 = arith.constant 0 : index
    %c0_0 = arith.constant 0 : index
    %c0_1 = arith.constant 0 : index
    %0 = vector.load %arg1[%c0, %c0_0, %c0_1] : memref<2x32x256xf32, #tpu.memory_space<vmem>>, vector<2x32x256xf32>
    %cst = arith.constant 0.000000e+00 : f32
    %1 = vector.broadcast %cst : f32 to vector<2x32x256xf32>
    %2 = arith.maximumf %0, %1 : vector<2x32x256xf32>
    %cst_2 = arith.constant dense<0.000000e+00> : vector<2x32xf32>
    %3 = vector.multi_reduction <add>, %2, %cst_2 [2] : vector<2x32x256xf32> to vector<2x32xf32>
    %c0_3 = arith.constant 0 : index
    %c0_4 = arith.constant 0 : index
    %4 = vector.load %arg2[%c0_3, %c0_4] : memref<32x256xf32, #tpu.memory_space<vmem>>, vector<32x256xf32>
    %cst_5 = arith.constant dense<0.000000e+00> : vector<2x256xf32>
    %5 = tpu.matmul %3, %4, %cst_5 {dimension_numbers = #tpu.dot_dimension_numbers<[1], [0], [0], [1], [0, 0, 1, 1], [], []>} : vector<2x32xf32>, vector<32x256xf32>, vector<2x256xf32> -> vector<2x256xf32>
    %c0_6 = arith.constant 0 : index
    %c0_7 = arith.constant 0 : index
    %6 = vector.load %arg3[%c0_6, %c0_7] : memref<1x256xf32, #tpu.memory_space<vmem>>, vector<1x256xf32>
    %7 = vector.broadcast %6 : vector<1x256xf32> to vector<2x256xf32>
    %8 = arith.addf %5, %7 : vector<2x256xf32>
    %9 = vector.extract_strided_slice %8 {offsets = [0, 0], sizes = [2, 128], strides = [1, 1]} : vector<2x256xf32> to vector<2x128xf32>
    %c0_8 = arith.constant 0 : index
    %c0_9 = arith.constant 0 : index
    %10 = vector.load %arg6[%c0_8, %c0_9] : memref<2x128xf32, #tpu.memory_space<vmem>>, vector<2x128xf32>
    tpu.vector_store %arg6[%c0_8, %c0_9], %9 {strides = array<i32>} : memref<2x128xf32, #tpu.memory_space<vmem>>, vector<2x128xf32>,
    %11 = vector.extract_strided_slice %8 {offsets = [0, 128], sizes = [2, 128], strides = [1, 1]} : vector<2x256xf32> to vector<2x128xf32>
    %cst_10 = arith.constant 0.000000e+00 : f32
    %12 = vector.broadcast %cst_10 : f32 to vector<2x128xf32>
    %13 = arith.maximumf %11, %12 : vector<2x128xf32>
    %c0_11 = arith.constant 0 : index
    %c0_12 = arith.constant 0 : index
    %14 = vector.load %arg4[%c0_11, %c0_12] : memref<128x128xf32, #tpu.memory_space<vmem>>, vector<128x128xf32>
    %cst_13 = arith.constant dense<0.000000e+00> : vector<2x128xf32>
    %15 = tpu.matmul %13, %14, %cst_13 {dimension_numbers = #tpu.dot_dimension_numbers<[1], [0], [0], [1], [0, 0, 1, 1], [], []>} : vector<2x128xf32>, vector<128x128xf32>, vector<2x128xf32> -> vector<2x128xf32>
    %c0_14 = arith.constant 0 : index
    %c0_15 = arith.constant 0 : index
    %16 = vector.load %arg5[%c0_14, %c0_15] : memref<1x128xf32, #tpu.memory_space<vmem>>, vector<1x128xf32>
    %17 = vector.broadcast %16 : vector<1x128xf32> to vector<2x128xf32>
    %18 = arith.addf %15, %17 : vector<2x128xf32>
    %19 = arith.negf %18 : vector<2x128xf32>
    %20 = math.exp %19 : vector<2x128xf32>
    %cst_16 = arith.constant 1.000000e+00 : f32
    %21 = vector.broadcast %cst_16 : f32 to vector<2x128xf32>
    %22 = arith.addf %21, %20 : vector<2x128xf32>
    %23 = arith.divf %21, %22 : vector<2x128xf32>
    %c0_17 = arith.constant 0 : index
    %c0_18 = arith.constant 0 : index
    %24 = vector.load %arg7[%c0_17, %c0_18] : memref<2x128xf32, #tpu.memory_space<vmem>>, vector<2x128xf32>
    tpu.vector_store %arg7[%c0_17, %c0_18], %23 {strides = array<i32>} : memref<2x128xf32, #tpu.memory_space<vmem>>, vector<2x128xf32>,
    return
  }
  func.func @transform_0(%arg0: i32) -> (i32, i32, i32) {
    %c0_i32 = arith.constant 0 : i32
    %c0_i32_0 = arith.constant 0 : i32
    %c0_i32_1 = arith.constant 0 : i32
    return %arg0, %c0_i32, %c0_i32_0 : i32, i32, i32
  }
  func.func @transform_1(%arg0: i32) -> (i32, i32) {
    %c0_i32 = arith.constant 0 : i32
    %c0_i32_0 = arith.constant 0 : i32
    %c0_i32_1 = arith.constant 0 : i32
    return %c0_i32, %c0_i32_0 : i32, i32
  }
  func.func @transform_2(%arg0: i32) -> (i32, i32) {
    %c0_i32 = arith.constant 0 : i32
    %c0_i32_0 = arith.constant 0 : i32
    %c0_i32_1 = arith.constant 0 : i32
    return %c0_i32, %c0_i32_0 : i32, i32
  }
  func.func @transform_3(%arg0: i32) -> (i32, i32) {
    %c0_i32 = arith.constant 0 : i32
    %c0_i32_0 = arith.constant 0 : i32
    %c0_i32_1 = arith.constant 0 : i32
    return %c0_i32, %c0_i32_0 : i32, i32
  }
  func.func @transform_4(%arg0: i32) -> (i32, i32) {
    %c0_i32 = arith.constant 0 : i32
    %c0_i32_0 = arith.constant 0 : i32
    %c0_i32_1 = arith.constant 0 : i32
    return %c0_i32, %c0_i32_0 : i32, i32
  }
  func.func @transform_5(%arg0: i32) -> (i32, i32) {
    %c0_i32 = arith.constant 0 : i32
    %c0_i32_0 = arith.constant 0 : i32
    return %arg0, %c0_i32 : i32, i32
  }
  func.func @transform_6(%arg0: i32) -> (i32, i32) {
    %c0_i32 = arith.constant 0 : i32
    %c0_i32_0 = arith.constant 0 : i32
    return %arg0, %c0_i32 : i32, i32
  }
}

</mosaic_0001>

<llo_original>
// kernel: tpu_custom_call.1
$region0: #{tpu_custom_call.1}
  #allocation0 [shape = 'u32[]', space=smem, size = 0x4, offset = 0x4, fixed_abs, tag = 'smem constant byte address 0x4 - core index']
  #allocation1 [shape = 'u32[144,128]{1,0:T(1,128)}', space=vmem, size = 0x12000, scoped, tag = 'internal scratch']
  %s0 = inlined_call_operand.hbm [shape: f32[2,32,256], index: 0, kind: input, shape index: {}]
  %s1 = inlined_call_operand.hbm [shape: f32[32,256], index: 1, kind: input, shape index: {}]
  %s2 = inlined_call_operand.vmem [shape: f32[1,256], index: 2, kind: input, shape index: {}]
  %s3 = inlined_call_operand.hbm [shape: f32[128,128], index: 3, kind: input, shape index: {}]
  %s4 = inlined_call_operand.vmem [shape: f32[1,128], index: 4, kind: input, shape index: {}]
  %s5 = inlined_call_operand.hbm [shape: f32[2,128], index: 5, kind: output, shape index: {0}]
  %s6 = inlined_call_operand.hbm [shape: f32[2,128], index: 6, kind: output, shape index: {1}]
  %7 = xla_tuple %s5, %s6
  %s8 = sld [smem:[#allocation0]]
  $region50: #{tpu_custom_call.1} parent=0
    _
  %s10 = ssub.s32 1, %s8
  %s11 = scalar_select 0, %s10, %s8
  $region1: #{tpu_custom_call.1} parent=0
    #allocation2 [shape = 'u8[65536]{0}', space=vmem, size = 0x10000, scoped, tag = 'input window, operand 0, single buffered']
    #allocation3 [shape = 's32[1]{0}', space=sflag, size = 0x4, scoped, tag = 'scoped memory for tpu_custom_call.1']
    #allocation4 [shape = 's32[1]{0}', space=sflag, size = 0x4, scoped, tag = 'scoped memory for tpu_custom_call.1']
    #allocation5 [shape = 'u8[32768]{0}', space=vmem, size = 0x8000, scoped, tag = 'input window, operand 1, single buffered']
    #allocation6 [shape = 's32[1]{0}', space=sflag, size = 0x4, scoped, tag = 'scoped memory for tpu_custom_call.1']
    #allocation7 [shape = 'u8[65536]{0}', space=vmem, size = 0x10000, scoped, tag = 'input window, operand 3, single buffered']
    #allocation8 [shape = 'u8[1024]{0}', space=vmem, size = 0x400, scoped, tag = 'output window, operand 0, single buffered']
    #allocation9 [shape = 'u8[1024]{0}', space=vmem, size = 0x400, scoped, tag = 'output window, operand 1, single buffered']
    #allocation10 [shape = 's32[1]{0}', space=sflag, size = 0x4, scoped, tag = 'scoped memory for tpu_custom_call.1']
    %12 = vsyncpa [#allocation3], 0
    %13 = vsyncpa [#allocation6], 0
    %14 = vsyncpa [#allocation4], 0
    %15 = vsyncpa [#allocation10], 0
    // Predicated region
    $region2: #{tpu_custom_call.1} parent=1 // pred_check
      _
    $region3: #{tpu_custom_call.1} parent=1 // pred_check_branch
      %17 = sbr.rel (0) target = $region5
    $region4: #{tpu_custom_call.1} parent=1 // pred_region
      %s19 = ssub.s32 2048, 2048
      %20 = vsyncadd [#allocation3], %s19
      %s21 = sshll.u32 [#allocation2], 4
      %s22 = int_to_ptr.vmem [resolvable:$true] %s21
      %27 = dma.hbm_to_vmem [thread:$0]  %s0, 2048, %s22, [#allocation3], 256, 256, 16
    $region5: #{tpu_custom_call.1} parent=1 // pred_fallthru
      _
    // Predicated region
    $region6: #{tpu_custom_call.1} parent=1 // pred_check
      _
    $region7: #{tpu_custom_call.1} parent=1 // pred_check_branch
      %29 = sbr.rel (0) target = $region9
    $region8: #{tpu_custom_call.1} parent=1 // pred_region
      %s31 = ssub.s32 1024, 1024
      %32 = vsyncadd [#allocation6], %s31
      %s33 = sshll.u32 [#allocation5], 4
      %s34 = int_to_ptr.vmem [resolvable:$true] %s33
      %39 = dma.hbm_to_vmem [thread:$0]  %s1, 1024, %s34, [#allocation6], 256, 256, 16
    $region9: #{tpu_custom_call.1} parent=1 // pred_fallthru
      _
    // Predicated region
    $region10: #{tpu_custom_call.1} parent=1 // pred_check
      _
    $region11: #{tpu_custom_call.1} parent=1 // pred_check_branch
      %41 = sbr.rel (0) target = $region13
    $region12: #{tpu_custom_call.1} parent=1 // pred_region
      _
    $region13: #{tpu_custom_call.1} parent=1 // pred_fallthru
      _
    // Predicated region
    $region14: #{tpu_custom_call.1} parent=1 // pred_check
      _
    $region15: #{tpu_custom_call.1} parent=1 // pred_check_branch
      %43 = sbr.rel (0) target = $region17
    $region16: #{tpu_custom_call.1} parent=1 // pred_region
      %s45 = ssub.s32 2048, 2048
      %46 = vsyncadd [#allocation6], %s45
      %s47 = sshll.u32 [#allocation7], 4
      %s48 = int_to_ptr.vmem [resolvable:$true] %s47
      %53 = dma.hbm_to_vmem [thread:$0]  %s3, 2048, %s48, [#allocation6], 128, 128, 8
    $region17: #{tpu_custom_call.1} parent=1 // pred_fallthru
      _
    // Predicated region
    $region18: #{tpu_custom_call.1} parent=1 // pred_check
      _
    $region19: #{tpu_custom_call.1} parent=1 // pred_check_branch
      %55 = sbr.rel (0) target = $region21
    $region20: #{tpu_custom_call.1} parent=1 // pred_region
      _
    $region21: #{tpu_custom_call.1} parent=1 // pred_fallthru
      _
    // Predicated region
    $region22: #{tpu_custom_call.1} parent=1 // pred_check
      _
    $region23: #{tpu_custom_call.1} parent=1 // pred_check_branch
      %57 = sbr.rel (0) target = $region25
    $region24: #{tpu_custom_call.1} parent=1 // pred_region
      %58 = dma.done [#allocation3], 2048
    $region25: #{tpu_custom_call.1} parent=1 // pred_fallthru
      _
    // Predicated region
    $region26: #{tpu_custom_call.1} parent=1 // pred_check
      _
    $region27: #{tpu_custom_call.1} parent=1 // pred_check_branch
      %60 = sbr.rel (0) target = $region29
    $region28: #{tpu_custom_call.1} parent=1 // pred_region
      %61 = dma.done [#allocation6], 1024
    $region29: #{tpu_custom_call.1} parent=1 // pred_fallthru
      _
    // Predicated region
    $region30: #{tpu_custom_call.1} parent=1 // pred_check
      _
    $region31: #{tpu_custom_call.1} parent=1 // pred_check_branch
      %63 = sbr.rel (0) target = $region33
    $region32: #{tpu_custom_call.1} parent=1 // pred_region
      %64 = dma.done [#allocation6], 2048
    $region33: #{tpu_custom_call.1} parent=1 // pred_fallthru
      _
    %v65 = vld [vmem:[#allocation2] sm:$0xff]
    %v66 = vld [vmem:[#allocation2 + $0x8] sm:$0xff]
    %v67 = vld [vmem:[#allocation2 + $0x10] sm:$0xff]
    %v68 = vld [vmem:[#allocation2 + $0x18] sm:$0xff]
    %v69 = vld [vmem:[#allocation2 + $0x20] sm:$0xff]
    %v70 = vld [vmem:[#allocation2 + $0x28] sm:$0xff]
    %v71 = vld [vmem:[#allocation2 + $0x30] sm:$0xff]
    %v72 = vld [vmem:[#allocation2 + $0x38] sm:$0xff]
    %v73 = vld [vmem:[#allocation2 + $0x40] sm:$0xff]
    %v74 = vld [vmem:[#allocation2 + $0x48] sm:$0xff]
    %v75 = vld [vmem:[#allocation2 + $0x50] sm:$0xff]
    %v76 = vld [vmem:[#allocation2 + $0x58] sm:$0xff]
    %v77 = vld [vmem:[#allocation2 + $0x60] sm:$0xff]
    %v78 = vld [vmem:[#allocation2 + $0x68] sm:$0xff]
    %v79 = vld [vmem:[#allocation2 + $0x70] sm:$0xff]
    %v80 = vld [vmem:[#allocation2 + $0x78] sm:$0xff]
    %v81 = vmax.f32 %v65, 0.0
    %v82 = vmax.f32 %v66, 0.0
    %v83 = vmax.f32 %v67, 0.0
    %v84 = vmax.f32 %v68, 0.0
    %v85 = vmax.f32 %v69, 0.0
    %v86 = vmax.f32 %v70, 0.0
    %v87 = vmax.f32 %v71, 0.0
    %v88 = vmax.f32 %v72, 0.0
    %v89 = vmax.f32 %v73, 0.0
    %v90 = vmax.f32 %v74, 0.0
    %v91 = vmax.f32 %v75, 0.0
    %v92 = vmax.f32 %v76, 0.0
    %v93 = vmax.f32 %v77, 0.0
    %v94 = vmax.f32 %v78, 0.0
    %v95 = vmax.f32 %v79, 0.0
    %v96 = vmax.f32 %v80, 0.0
    %v97 = vadd.f32 %v81, %v82
    %98 = vadd.xlane.f32.xlu0 %v97
    %v99 = vpop.xlane.xlu0 %98
    %v100 = vadd.f32 %v83, %v84
    %101 = vadd.xlane.f32.xlu0 %v100
    %v102 = vpop.xlane.xlu0 %101
    %v103 = vadd.f32 %v85, %v86
    %104 = vadd.xlane.f32.xlu0 %v103
    %v105 = vpop.xlane.xlu0 %104
    %v106 = vadd.f32 %v87, %v88
    %107 = vadd.xlane.f32.xlu0 %v106
    %v108 = vpop.xlane.xlu0 %107
    %v109 = vadd.f32 %v89, %v90
    %110 = vadd.xlane.f32.xlu0 %v109
    %v111 = vpop.xlane.xlu0 %110
    %v112 = vadd.f32 %v91, %v92
    %113 = vadd.xlane.f32.xlu0 %v112
    %v114 = vpop.xlane.xlu0 %113
    %v115 = vadd.f32 %v93, %v94
    %116 = vadd.xlane.f32.xlu0 %v115
    %v117 = vpop.xlane.xlu0 %116
    %v118 = vadd.f32 %v95, %v96
    %119 = vadd.xlane.f32.xlu0 %v118
    %v120 = vpop.xlane.xlu0 %119
    %v121 = vld [vmem:[#allocation5] sm:$0xff]
    %v122 = vld [vmem:[#allocation5 + $0x8] sm:$0xff]
    %v123 = vld [vmem:[#allocation5 + $0x10] sm:$0xff]
    %v124 = vld [vmem:[#allocation5 + $0x18] sm:$0xff]
    %v125 = vld [vmem:[#allocation5 + $0x20] sm:$0xff]
    %v126 = vld [vmem:[#allocation5 + $0x28] sm:$0xff]
    %v127 = vld [vmem:[#allocation5 + $0x30] sm:$0xff]
    %v128 = vld [vmem:[#allocation5 + $0x38] sm:$0xff]
    %v129 = vld [vmem:[%s2] sm:$0x3]
    %v131 = vlaneseq
    %v132 = vshrl.u32 %v131, 7
    %v133 = vsub.s32 0, %v132
    %v134 = vrot.slane %v129, %v133
    %v135 = vlaneseq
    %v136 = vshrl.u32 %v135, 7
    %v137 = vsub.s32 1, %v136
    %v138 = vrot.slane %v129, %v137
    %v149 = vlaneseq
    %v150 = vand.u32 %v149, 127
    %v151 = vlaneseq
    %v152 = vshrl.u32 %v151, 7
    %v153 = vsub.s32 %v150, %v152
    %v154 = vrot.slane %v99, %v153
    %v155 = vadd.s32 %v150, 4294967288
    %v156 = vlaneseq
    %v157 = vshrl.u32 %v156, 7
    %v158 = vsub.s32 %v155, %v157
    %v159 = vrot.slane %v102, %v158
    %vm160 = vcmask 130112
    %v161 = vsel %vm160, %v159, %v154
    %v162 = vadd.s32 %v150, 4294967280
    %v163 = vlaneseq
    %v164 = vshrl.u32 %v163, 7
    %v165 = vsub.s32 %v162, %v164
    %v166 = vrot.slane %v105, %v165
    %vm167 = vcmask 195712
    %v168 = vsel %vm167, %v166, %v161
    %v169 = vadd.s32 %v150, 4294967272
    %v170 = vlaneseq
    %v171 = vshrl.u32 %v170, 7
    %v172 = vsub.s32 %v169, %v171
    %v173 = vrot.slane %v108, %v172
    %vm174 = vcmask 261312
    %v175 = vsel %vm174, %v173, %v168
    %v176 = vlaneseq
    %v177 = vshrl.u32 %v176, 7
    %v178 = vsub.s32 %v150, %v177
    %v179 = vrot.slane %v111, %v178
    %v180 = vlaneseq
    %v181 = vshrl.u32 %v180, 7
    %v182 = vsub.s32 %v155, %v181
    %v183 = vrot.slane %v114, %v182
    %v184 = vsel %vm160, %v183, %v179
    %v185 = vlaneseq
    %v186 = vshrl.u32 %v185, 7
    %v187 = vsub.s32 %v162, %v186
    %v188 = vrot.slane %v117, %v187
    %v189 = vsel %vm167, %v188, %v184
    %v190 = vlaneseq
    %v191 = vshrl.u32 %v190, 7
    %v192 = vsub.s32 %v169, %v191
    %v193 = vrot.slane %v120, %v192
    %v194 = vsel %vm174, %v193, %v189
    %vm195 = vcmask 1041409
    %v196 = vsel %vm195, %v194, %v175
    %vm197 = vcmask 261120
    %v198 = vsel %vm197, %v196, 0
    %200 = vmatprep.subr.mxu0 0.0
    %201 = vmatpush1.msra.mxu0 0.0
    %202 = vmatprep.subr.mxu0 0.0
    %203 = vmatpush1.msra.mxu0 0.0
    %204 = vmatprep.subr.mxu0 0.0
    %205 = vmatpush1.msra.mxu0 0.0
    %206 = vmatprep.subr.mxu0 0.0
    %207 = vmatpush1.msra.mxu0 0.0
    %208 = vmatprep.subr.mxu0 0.0
    %209 = vmatpush1.msra.mxu0 0.0
    %210 = vmatprep.subr.mxu0 0.0
    %211 = vmatpush1.msra.mxu0 0.0
    %212 = vmatprep.subr.mxu0 0.0
    %213 = vmatpush1.msra.mxu0 0.0
    %214 = vmatprep.subr.mxu0 0.0
    %215 = vmatpush1.msra.mxu0 0.0
    %216 = vmatprep.subr.mxu0 0.0
    %217 = vmatpush1.msra.mxu0 0.0
    %218 = vmatprep.subr.mxu0 0.0
    %219 = vmatpush1.msra.mxu0 0.0
    %220 = vmatprep.subr.mxu0 0.0
    %221 = vmatpush1.msra.mxu0 0.0
    %222 = vmatprep.subr.mxu0 0.0
    %223 = vmatpush1.msra.mxu0 0.0
    %224 = vmatprep.subr.mxu0 %v128
    %225 = vmatpush1.msra.mxu0 %v127
    %226 = vmatprep.subr.mxu0 %v126
    %227 = vmatpush1.msra.mxu0 %v125
    %228 = vmatprep.subr.mxu0 %v124
    %229 = vmatpush1.msra.mxu0 %v123
    %230 = vmatprep.subr.mxu0 %v122
    %231 = vmatpush1.msra.mxu0 %v121
    %232 = vmatprep.subr.mxu0 0.0
    %233 = vmatpush2.msra.mxu0 0.0
    %234 = vmatprep.subr.mxu0 0.0
    %235 = vmatpush2.msra.mxu0 0.0
    %236 = vmatprep.subr.mxu0 0.0
    %237 = vmatpush2.msra.mxu0 0.0
    %238 = vmatprep.subr.mxu0 0.0
    %239 = vmatpush2.msra.mxu0 0.0
    %240 = vmatprep.subr.mxu0 0.0
    %241 = vmatpush2.msra.mxu0 0.0
    %242 = vmatprep.subr.mxu0 0.0
    %243 = vmatpush2.msra.mxu0 0.0
    %244 = vmatprep.subr.mxu0 0.0
    %245 = vmatpush2.msra.mxu0 0.0
    %246 = vmatprep.subr.mxu0 0.0
    %247 = vmatpush2.msra.mxu0 0.0
    %248 = vmatprep.subr.mxu0 0.0
    %249 = vmatpush2.msra.mxu0 0.0
    %250 = vmatprep.subr.mxu0 0.0
    %251 = vmatpush2.msra.mxu0 0.0
    %252 = vmatprep.subr.mxu0 0.0
    %253 = vmatpush2.msra.mxu0 0.0
    %254 = vmatprep.subr.mxu0 0.0
    %255 = vmatpush2.msra.mxu0 0.0
    %256 = vmatprep.subr.mxu0 0.0
    %257 = vmatpush2.msra.mxu0 0.0
    %258 = vmatprep.subr.mxu0 0.0
    %259 = vmatpush2.msra.mxu0 0.0
    %260 = vmatprep.subr.mxu0 0.0
    %261 = vmatpush2.msra.mxu0 0.0
    %262 = vmatprep.subr.mxu0 0.0
    %263 = vmatpush2.msra.mxu0 0.0
    %264 = vmatprep.mubr.f32.mxu0 0.0
    %265 = vmatmul.mubr.f32.gmra.mxu0 %v198
    %v266 = vpop.f32.mrf.mxu0
    %v267 = vadd.f32 %v134, %v266
    %v268 = vpop.f32.mrf.mxu0
    %v269 = vadd.f32 %v138, %v268
    %270 = vdwg.mxu0
    %271 = vst [vmem:[#allocation8] sm:$0x3] %v267
    %v272 = vmax.f32 %v269, 0.0
    %v273 = vld [vmem:[#allocation7] sm:$0xff]
    %v274 = vld [vmem:[#allocation7 + $0x8] sm:$0xff]
    %v275 = vld [vmem:[#allocation7 + $0x10] sm:$0xff]
    %v276 = vld [vmem:[#allocation7 + $0x18] sm:$0xff]
    %v277 = vld [vmem:[#allocation7 + $0x20] sm:$0xff]
    %v278 = vld [vmem:[#allocation7 + $0x28] sm:$0xff]
    %v279 = vld [vmem:[#allocation7 + $0x30] sm:$0xff]
    %v280 = vld [vmem:[#allocation7 + $0x38] sm:$0xff]
    %v281 = vld [vmem:[#allocation7 + $0x40] sm:$0xff]
    %v282 = vld [vmem:[#allocation7 + $0x48] sm:$0xff]
    %v283 = vld [vmem:[#allocation7 + $0x50] sm:$0xff]
    %v284 = vld [vmem:[#allocation7 + $0x58] sm:$0xff]
    %v285 = vld [vmem:[#allocation7 + $0x60] sm:$0xff]
    %v286 = vld [vmem:[#allocation7 + $0x68] sm:$0xff]
    %v287 = vld [vmem:[#allocation7 + $0x70] sm:$0xff]
    %v288 = vld [vmem:[#allocation7 + $0x78] sm:$0xff]
    %v289 = vld [vmem:[%s4] sm:$0x1]
    %v291 = vlaneseq
    %v292 = vshrl.u32 %v291, 7
    %v293 = vsub.s32 0, %v292
    %v294 = vrot.slane %v289, %v293
    %296 = vmatprep.subr.mxu0 0.0
    %297 = vmatpush1.msra.mxu0 %v288
    %298 = vmatprep.subr.mxu0 0.0
    %299 = vmatpush1.msra.mxu0 %v287
    %300 = vmatprep.subr.mxu0 0.0
    %301 = vmatpush1.msra.mxu0 %v286
    %302 = vmatprep.subr.mxu0 0.0
    %303 = vmatpush1.msra.mxu0 %v285
    %304 = vmatprep.subr.mxu0 0.0
    %305 = vmatpush1.msra.mxu0 %v284
    %306 = vmatprep.subr.mxu0 0.0
    %307 = vmatpush1.msra.mxu0 %v283
    %308 = vmatprep.subr.mxu0 0.0
    %309 = vmatpush1.msra.mxu0 %v282
    %310 = vmatprep.subr.mxu0 0.0
    %311 = vmatpush1.msra.mxu0 %v281
    %312 = vmatprep.subr.mxu0 0.0
    %313 = vmatpush1.msra.mxu0 %v280
    %314 = vmatprep.subr.mxu0 0.0
    %315 = vmatpush1.msra.mxu0 %v279
    %316 = vmatprep.subr.mxu0 0.0
    %317 = vmatpush1.msra.mxu0 %v278
    %318 = vmatprep.subr.mxu0 0.0
    %319 = vmatpush1.msra.mxu0 %v277
    %320 = vmatprep.subr.mxu0 0.0
    %321 = vmatpush1.msra.mxu0 %v276
    %322 = vmatprep.subr.mxu0 0.0
    %323 = vmatpush1.msra.mxu0 %v275
    %324 = vmatprep.subr.mxu0 0.0
    %325 = vmatpush1.msra.mxu0 %v274
    %326 = vmatprep.subr.mxu0 0.0
    %327 = vmatpush1.msra.mxu0 %v273
    %328 = vmatprep.subr.mxu0 0.0
    %329 = vmatpush2.msra.mxu0 0.0
    %330 = vmatprep.subr.mxu0 0.0
    %331 = vmatpush2.msra.mxu0 0.0
    %332 = vmatprep.subr.mxu0 0.0
    %333 = vmatpush2.msra.mxu0 0.0
    %334 = vmatprep.subr.mxu0 0.0
    %335 = vmatpush2.msra.mxu0 0.0
    %336 = vmatprep.subr.mxu0 0.0
    %337 = vmatpush2.msra.mxu0 0.0
    %338 = vmatprep.subr.mxu0 0.0
    %339 = vmatpush2.msra.mxu0 0.0
    %340 = vmatprep.subr.mxu0 0.0
    %341 = vmatpush2.msra.mxu0 0.0
    %342 = vmatprep.subr.mxu0 0.0
    %343 = vmatpush2.msra.mxu0 0.0
    %344 = vmatprep.subr.mxu0 0.0
    %345 = vmatpush2.msra.mxu0 0.0
    %346 = vmatprep.subr.mxu0 0.0
    %347 = vmatpush2.msra.mxu0 0.0
    %348 = vmatprep.subr.mxu0 0.0
    %349 = vmatpush2.msra.mxu0 0.0
    %350 = vmatprep.subr.mxu0 0.0
    %351 = vmatpush2.msra.mxu0 0.0
    %352 = vmatprep.subr.mxu0 0.0
    %353 = vmatpush2.msra.mxu0 0.0
    %354 = vmatprep.subr.mxu0 0.0
    %355 = vmatpush2.msra.mxu0 0.0
    %356 = vmatprep.subr.mxu0 0.0
    %357 = vmatpush2.msra.mxu0 0.0
    %358 = vmatprep.subr.mxu0 0.0
    %359 = vmatpush2.msra.mxu0 0.0
    %360 = vmatprep.mubr.f32.mxu0 0.0
    %361 = vmatmul.mubr.f32.gmra.mxu0 %v272
    %v362 = vpop.f32.mrf.mxu0
    %v363 = vadd.f32 %v294, %v362
    %v364 = vpop.f32.mrf.mxu0
    %365 = vdwg.mxu0
    %v366 = vxor.u32 %v363, 2147483648
    %v367 = vmul.f32 %v366, 1.442695
    %v368 = vpow.pop %v367
    %v369 = vadd.f32 %v368, 1.0
    %v370 = vrcp.pop %v369
    %v371 = vmul.f32 1.0, %v370
    %372 = vst [vmem:[#allocation9] sm:$0x3] %v371
    // Predicated region
    $region34: #{tpu_custom_call.1} parent=1 // pred_check
      _
    $region35: #{tpu_custom_call.1} parent=1 // pred_check_branch
      %374 = sbr.rel (0) target = $region37
    $region36: #{tpu_custom_call.1} parent=1 // pred_region
      %s376 = ssub.s32 32, 32
      %377 = vsyncadd [#allocation4], %s376
      %s379 = sshll.u32 [#allocation8], 4
      %s380 = int_to_ptr.vmem [resolvable:$true] %s379
      %382 = dma.vmem_to_hbm [thread:$0]  %s380, 32, %s5, [#allocation4]
    $region37: #{tpu_custom_call.1} parent=1 // pred_fallthru
      _
    // Predicated region
    $region38: #{tpu_custom_call.1} parent=1 // pred_check
      _
    $region39: #{tpu_custom_call.1} parent=1 // pred_check_branch
      %384 = sbr.rel (0) target = $region41
    $region40: #{tpu_custom_call.1} parent=1 // pred_region
      %s386 = ssub.s32 32, 32
      %387 = vsyncadd [#allocation10], %s386
      %s389 = sshll.u32 [#allocation9], 4
      %s390 = int_to_ptr.vmem [resolvable:$true] %s389
      %392 = dma.vmem_to_hbm [thread:$0]  %s390, 32, %s6, [#allocation10]
    $region41: #{tpu_custom_call.1} parent=1 // pred_fallthru
      _
    // Predicated region
    $region42: #{tpu_custom_call.1} parent=1 // pred_check
      _
    $region43: #{tpu_custom_call.1} parent=1 // pred_check_branch
      %394 = sbr.rel (0) target = $region45
    $region44: #{tpu_custom_call.1} parent=1 // pred_region
      %395 = dma.done [#allocation4], 32
    $region45: #{tpu_custom_call.1} parent=1 // pred_fallthru
      _
    // Predicated region
    $region46: #{tpu_custom_call.1} parent=1 // pred_check
      _
    $region47: #{tpu_custom_call.1} parent=1 // pred_check_branch
      %397 = sbr.rel (0) target = $region49
    $region48: #{tpu_custom_call.1} parent=1 // pred_region
      %398 = dma.done [#allocation10], 32
    $region49: #{tpu_custom_call.1} parent=1 // pred_fallthru
      _
    %399 = vsyncpa [#allocation3], 1
    %400 = vsyncpa [#allocation6], 1
    %401 = vsyncpa [#allocation4], 1
    %402 = vsyncpa [#allocation10], 1

</llo_original>
